<compile_context>
chip_gen: v7x
topology: tpu7x:2x2x1
jax: 0.10.0
libtpu: 0.0.40
codegen_flags: <defaults>
</compile_context>

<pallas_src>
import functools

import jax
import jax.numpy as jnp
from jax.experimental import pallas as pl
from jax.experimental.pallas import tpu as pltpu


# --------------------------------------------------------------------------- #
# In-kernel helpers
# --------------------------------------------------------------------------- #
def _shift_right(v, fill_col, first_mask):
    """result[:, c] = v[:, c-1]; columns where first_mask is True get fill_col."""
    w = v.shape[-1]
    if w % 128 == 0:
        shifted = pltpu.roll(v, 1, axis=1)          # XLU rotate (spare slot)
    elif w > 1:
        shifted = jnp.concatenate([v[:, :1], v[:, :-1]], axis=1)
    else:
        shifted = v                                  # fully overwritten by mask
    return jnp.where(first_mask, fill_col, shifted)


def _shift_left(v, fill_col, last_mask):
    """result[:, c] = v[:, c+1]; columns where last_mask is True get fill_col."""
    w = v.shape[-1]
    if w % 128 == 0:
        shifted = pltpu.roll(v, w - 1, axis=1)       # == roll by -1
    elif w > 1:
        shifted = jnp.concatenate([v[:, 1:], v[:, -1:]], axis=1)
    else:
        shifted = v
    return jnp.where(last_mask, fill_col, shifted)


def _conv3(w_ref, b_ref, x0, x_m1, x_p1):
    """k=3 conv as three accumulating MXU dots with f32 accumulation.
    PyTorch cross-correlation: tap 0 pairs with x[c-1], tap 1 with x[c],
    tap 2 with x[c+1]."""
    f32 = jnp.float32
    y = jnp.dot(w_ref[1], x0, preferred_element_type=f32)
    y = y + jnp.dot(w_ref[0], x_m1, preferred_element_type=f32)
    y = y + jnp.dot(w_ref[2], x_p1, preferred_element_type=f32)
    return y + b_ref[...]


# --------------------------------------------------------------------------- #
# Kernels
# --------------------------------------------------------------------------- #
def _rb_masked_kernel(*refs, identity, batched, seq_len):
    """Whole-sequence(s)-in-one-tile kernel.  Sequence boundaries (conv zero
    padding) are handled with a per-lane position map, so several batch rows
    may be packed along the lane axis."""
    # ref order: pos, x, w1, b1, w2, b2, [wres, bres,] out
    pos_ref, x_ref, w1_ref, b1_ref, w2_ref, b2_ref, *rest = refs
    if identity:
        (out_ref,) = rest
        wres_ref = bres_ref = None
    else:
        wres_ref, bres_ref, out_ref = rest

    f32 = jnp.float32
    xc = x_ref[0] if batched else x_ref[...]          # (Cin, W)
    pos = pos_ref[...]                                # (1, W) position in its sequence
    first_lane = pos == 0                             # left conv zero padding
    last_lane = pos == seq_len - 1                    # right conv zero padding
    zx = jnp.zeros_like(xc[:, :1])

    # ---- conv1: roll/mask shifted operands + three accumulating dots --------
    x_m1 = _shift_right(xc, zx, first_lane)           # x[c-1]
    x_p1 = _shift_left(xc, zx, last_lane)             # x[c+1]
    h = jnp.maximum(_conv3(w1_ref, b1_ref, xc, x_m1, x_p1), 0.0)   # (Cout, W) f32
    hc = h.astype(w2_ref.dtype)                       # cast once, right after relu

    # ---- conv2 ---------------------------------------------------------------
    zh = jnp.zeros_like(hc[:, :1])
    h_m1 = _shift_right(hc, zh, first_lane)
    h_p1 = _shift_left(hc, zh, last_lane)
    out2 = _conv3(w2_ref, b2_ref, hc, h_m1, h_p1)

    # ---- residual ------------------------------------------------------------
    if identity:
        resid = xc.astype(f32)
    else:
        resid = jnp.dot(wres_ref[...], xc, preferred_element_type=f32) + bres_ref[...]

    y = jnp.maximum(out2 + resid, 0.0).astype(out_ref.dtype)
    if batched:
        out_ref[0] = y
    else:
        out_ref[...] = y


def _rb_tiled_kernel(*refs, identity):
    """Tiled-L kernel: the k=3 halo comes from two 128-wide clamped neighbour
    blocks of x; true sequence edges are zero-masked in kernel."""
    # ref order: x, x_left_halo, x_right_halo, w1, b1, w2, b2, [wres, bres,] out
    x_ref, xl_ref, xr_ref, w1_ref, b1_ref, w2_ref, b2_ref, *rest = refs
    if identity:
        (out_ref,) = rest
        wres_ref = bres_ref = None
    else:
        wres_ref, bres_ref, out_ref = rest

    f32 = jnp.float32
    tl = out_ref.shape[-1]
    xc = x_ref[0]                                    # (Cin, TL)
    xl = xl_ref[0]                                   # (Cin, 128): cols [t0-128, t0)
    xr = xr_ref[0]                                   # (Cin, 128): cols [t0+TL, t0+TL+128)

    j = pl.program_id(1)
    is_first = j == 0
    is_last = j == pl.num_programs(1) - 1
    zx = jnp.zeros_like(xc[:, :1])
    hw = xl.shape[-1]
    xm2 = jnp.where(is_first, zx, xl[:, hw - 2:hw - 1])   # x[t0-2]
    xm1 = jnp.where(is_first, zx, xl[:, hw - 1:hw])       # x[t0-1]
    xp0 = jnp.where(is_last, zx, xr[:, 0:1])              # x[t0+TL]
    xp1 = jnp.where(is_last, zx, xr[:, 1:2])              # x[t0+TL+1]

    lane = jax.lax.broadcasted_iota(jnp.int32, (1, tl), 1)
    first_lane = lane == 0
    last_lane = lane == tl - 1

    # ---- conv1 ---------------------------------------------------------------
    x_m1 = _shift_right(xc, xm1, first_lane)
    x_p1 = _shift_left(xc, xp0, last_lane)
    h = jnp.maximum(_conv3(w1_ref, b1_ref, xc, x_m1, x_p1), 0.0)
    hc = h.astype(w2_ref.dtype)

    # conv1 on the two columns just outside the tile (conv2's halo): tiny
    # 2-lane dots on halo columns that are already resident.
    e_m1 = jnp.concatenate([xm2, xc[:, tl - 1:tl]], axis=1)   # x[t-1] per edge col
    e_0 = jnp.concatenate([xm1, xp0], axis=1)                 # x[t]
    e_p1 = jnp.concatenate([xc[:, 0:1], xp1], axis=1)         # x[t+1]
    h_e = jnp.maximum(_conv3(w1_ref, b1_ref, e_0, e_m1, e_p1), 0.0)
    zh = jnp.zeros_like(h_e[:, :1])
    h_l = jnp.where(is_first, zh, h_e[:, 0:1]).astype(hc.dtype)   # h[t0-1]
    h_r = jnp.where(is_last, zh, h_e[:, 1:2]).astype(hc.dtype)    # h[t0+TL]

    # ---- conv2 ---------------------------------------------------------------
    h_m1 = _shift_right(hc, h_l, first_lane)
    h_p1 = _shift_left(hc, h_r, last_lane)
    out2 = _conv3(w2_ref, b2_ref, hc, h_m1, h_p1)

    # ---- residual ------------------------------------------------------------
    if identity:
        resid = xc.astype(f32)
    else:
        resid = jnp.dot(wres_ref[...], xc, preferred_element_type=f32) + bres_ref[...]

    out_ref[0] = jnp.maximum(out2 + resid, 0.0).astype(out_ref.dtype)


# --------------------------------------------------------------------------- #
# Planning helpers (generation-aware)
# --------------------------------------------------------------------------- #
def _vmem_capacity_bytes():
    """Per-core VMEM capacity: 128 MiB on v5e/v6e, 64 MiB on v7x."""
    try:
        cap = getattr(pltpu.get_tpu_info(), "vmem_capacity_bytes", None)
        if cap:
            return int(cap)
    except Exception:
        pass
    return 64 * 1024 * 1024          # conservative fallback (v7x per-TC VMEM)


def _tile_bytes(width, c_in, c_out, esize):
    """Per-grid-step working set: double-buffered x/out blocks, the two rolled
    copies of x and of the hidden activation, and the f32 accumulators
    (h, out2, resid)."""
    per_lane = (c_in * 4 * esize           # x block (2 bufs) + x_m1 + x_p1
                + c_out * 5 * esize        # out block (2 bufs) + hc + h_m1 + h_p1
                + c_out * 3 * 4)           # h / out2 / resid kept in f32
    return width * per_lane


def _choose_plan(n, length, c_in, c_out, esize, vmem_cap, max_tile):
    budget = max(vmem_cap // 6, 4 << 20)

    def ok(width):
        if max_tile is not None and width > max_tile:
            return False
        return _tile_bytes(width, c_in, c_out, esize) <= budget

    if length % 128 == 0:
        for cand in (length, 16384, 8192, 4096, 2048, 1024, 512, 256, 128):
            if cand <= length and length % cand == 0 and ok(cand):
                return ("per_seq", length) if cand == length else ("tiled", cand)
        return "tiled", 128
    # L not lane-aligned (< 128 or odd): fold batch rows into the lane axis so
    # the output stays as lane-dense as the problem allows.
    for g in range(n, 0, -1):
        if n % g:
            continue
        width = g * length
        if not ok(width):
            continue
        if g != n and width % 128 != 0:
            continue
        return "folded", g
    return "per_seq", length                 # fallback: lane-sparse but correct


def _vmem_limit_bytes(est, vmem_cap):
    cap = min((vmem_cap * 3) // 4, 96 * 1024 * 1024)
    return int(min(max(est, min(32 * 1024 * 1024, cap)), cap))


# --------------------------------------------------------------------------- #
# Wrapper
# --------------------------------------------------------------------------- #
def residual_block(x, params, *, compute_dtype=jnp.float32, max_tile=None):
    """ResidualBlock forward.  x: (N, Cin, L) in PyTorch NCL layout.

    compute_dtype: dtype of MXU operands / x DMA (bf16 recommended on v6e/v7x;
    accumulation is always f32).  max_tile: optional cap on the L tile width
    (mainly for testing the halo path at small shapes)."""
    w1, b1, w2, b2, wres, bres = params         # PyTorch Conv1d layouts (O, I, K)
    N, Cin, L = x.shape
    Cout = w1.shape[0]
    identity = wres is None
    esize = jnp.dtype(compute_dtype).itemsize

    # Per-tap weights (3, Cout, Cin): one accumulating dot per tap in-kernel.
    w1t = jnp.transpose(w1, (2, 0, 1)).astype(compute_dtype)
    w2t = jnp.transpose(w2, (2, 0, 1)).astype(compute_dtype)
    b1c = b1.reshape(Cout, 1).astype(jnp.float32)
    b2c = b2.reshape(Cout, 1).astype(jnp.float32)

    zero2 = lambda *a: (0, 0)
    zero3 = lambda *a: (0, 0, 0)
    weight_specs = [pl.BlockSpec((3, Cout, Cin), zero3),
                    pl.BlockSpec((Cout, 1), zero2),
                    pl.BlockSpec((3, Cout, Cout), zero3),
                    pl.BlockSpec((Cout, 1), zero2)]
    weight_args = [w1t, b1c, w2t, b2c]
    if not identity:
        weight_specs += [pl.BlockSpec((Cout, Cin), zero2),
                         pl.BlockSpec((Cout, 1), zero2)]
        weight_args += [wres[:, :, 0].astype(compute_dtype),
                        bres.reshape(Cout, 1).astype(jnp.float32)]

    vmem_cap = _vmem_capacity_bytes()
    mode, width = _choose_plan(N, L, Cin, Cout, esize, vmem_cap, max_tile)
    out_dtype = x.dtype

    if mode == "tiled":
        # Grid over (batch, L tiles); halo from 128-wide clamped neighbours.
        tl = width
        n_lt = L // tl
        r = tl // 128
        n_w = L // 128
        xk = x.astype(compute_dtype)
        in_specs = [
            pl.BlockSpec((1, Cin, tl), lambda n, j: (n, 0, j)),
            pl.BlockSpec((1, Cin, 128),
                         lambda n, j: (n, 0, jnp.maximum(j * r - 1, 0))),
            pl.BlockSpec((1, Cin, 128),
                         lambda n, j: (n, 0, jnp.minimum((j + 1) * r, n_w - 1))),
        ] + weight_specs
        args = [xk, xk, xk] + weight_args
        est = _tile_bytes(tl, Cin, Cout, esize) + (6 << 20)
        kernel = functools.partial(_rb_tiled_kernel, identity=identity)
        return pl.pallas_call(
            kernel,
            out_shape=jax.ShapeDtypeStruct((N, Cout, L), out_dtype),
            grid_spec=pltpu.PrefetchScalarGridSpec(
                num_scalar_prefetch=0, grid=(N, n_lt),
                in_specs=in_specs,
                out_specs=pl.BlockSpec((1, Cout, tl), lambda n, j: (n, 0, j))),
            compiler_params=pltpu.CompilerParams(
                dimension_semantics=("parallel", "parallel"),
                vmem_limit_bytes=_vmem_limit_bytes(est, vmem_cap)),
        )(*args)

    if mode == "per_seq":
        # One whole sequence per grid step, NCL layout untouched (lane-dense
        # whenever L is a multiple of 128).
        xk = x.astype(compute_dtype)
        pos = jnp.arange(L, dtype=jnp.int32).reshape(1, L)
        in_specs = [
            pl.BlockSpec((1, L), lambda n: (0, 0)),
            pl.BlockSpec((1, Cin, L), lambda n: (n, 0, 0)),
        ] + weight_specs
        args = [pos, xk] + weight_args
        est = _tile_bytes(L, Cin, Cout, esize) + (6 << 20)
        kernel = functools.partial(_rb_masked_kernel, identity=identity,
                                   batched=True, seq_len=L)
        return pl.pallas_call(
            kernel,
            out_shape=jax.ShapeDtypeStruct((N, Cout, L), out_dtype),
            grid_spec=pltpu.PrefetchScalarGridSpec(
                num_scalar_prefetch=0, grid=(N,),
                in_specs=in_specs,
                out_specs=pl.BlockSpec((1, Cout, L), lambda n: (n, 0, 0))),
            compiler_params=pltpu.CompilerParams(
                dimension_semantics=("parallel",),
                vmem_limit_bytes=_vmem_limit_bytes(est, vmem_cap)),
        )(*args)

    # mode == "folded": batch rows packed along the lane axis (small /
    # unaligned L); sequence boundaries handled by the per-lane position map.
    G = width
    TW = G * L
    n_g = N // G
    xf = jnp.transpose(x, (1, 0, 2)).reshape(Cin, N * L).astype(compute_dtype)
    pos = jnp.tile(jnp.arange(L, dtype=jnp.int32), G).reshape(1, TW)
    in_specs = [
        pl.BlockSpec((1, TW), lambda g: (0, 0)),
        pl.BlockSpec((Cin, TW), lambda g: (0, g)),
    ] + weight_specs
    args = [pos, xf] + weight_args
    est = _tile_bytes(TW, Cin, Cout, esize) + (6 << 20)
    kernel = functools.partial(_rb_masked_kernel, identity=identity,
                               batched=False, seq_len=L)
    out_f = pl.pallas_call(
        kernel,
        out_shape=jax.ShapeDtypeStruct((Cout, N * L), out_dtype),
        grid_spec=pltpu.PrefetchScalarGridSpec(
            num_scalar_prefetch=0, grid=(n_g,),
            in_specs=in_specs,
            out_specs=pl.BlockSpec((Cout, TW), lambda g: (0, g))),
        compiler_params=pltpu.CompilerParams(
            dimension_semantics=("parallel",),
            vmem_limit_bytes=_vmem_limit_bytes(est, vmem_cap)),
    )(*args)
    return jnp.transpose(out_f.reshape(Cout, N, L), (1, 0, 2))


# --------------------------------------------------------------------------- #
# Parameters / reference / test harness
# --------------------------------------------------------------------------- #
def make_params(key, c_in, c_out):
    """Deterministic synthetic parameters in PyTorch Conv1d layout (O, I, K)."""
    ks = jax.random.split(key, 6)
    w1 = 0.1 * jax.random.normal(ks[0], (c_out, c_in, 3), jnp.float32)
    b1 = 0.1 * jax.random.normal(ks[1], (c_out,), jnp.float32)
    w2 = 0.1 * jax.random.normal(ks[2], (c_out, c_out, 3), jnp.float32)
    b2 = 0.1 * jax.random.normal(ks[3], (c_out,), jnp.float32)
    if c_in != c_out:
        wres = 0.1 * jax.random.normal(ks[4], (c_out, c_in, 1), jnp.float32)
        bres = 0.1 * jax.random.normal(ks[5], (c_out,), jnp.float32)
    else:
        wres, bres = None, None          # nn.Identity()
    return w1, b1, w2, b2, wres, bres


def ref_forward(x, params):
    """Plain-JAX reference identical to the PyTorch forward."""
    w1, b1, w2, b2, wres, bres = params

    def conv1d(inp, wt, bias, pad):
        y = jax.lax.conv_general_dilated(
            inp, wt, window_strides=(1,), padding=[(pad, pad)],
            dimension_numbers=("NCH", "OIH", "NCH"))
        return y + bias[None, :, None]

    residual = x if wres is None else conv1d(x, wres, bres, 0)
    h = jax.nn.relu(conv1d(x, w1, b1, 1))
    return jax.nn.relu(conv1d(h, w2, b2, 1) + residual)


if __name__ == "__main__":
    key = jax.random.PRNGKey(0)
    # (N, Cin, Cout, L, max_tile, compute_dtype, max_abs_err)
    configs = [
        (2, 4, 8, 16, None, jnp.float32, 1e-4),      # folded lanes, 1x1 residual
        (2, 4, 4, 16, None, jnp.float32, 1e-4),      # folded lanes, Identity residual
        (2, 8, 16, 512, None, jnp.float32, 1e-4),    # lane-dense per-sequence tile
        (2, 8, 16, 1024, 256, jnp.float32, 1e-4),    # tiled L with halo blocks
        (2, 8, 16, 512, None, jnp.bfloat16, 1.5e-1), # bf16 operands (v6e/v7x mode)
    ]
    for (N, Cin, Cout, L, max_tile, cdt, tol) in configs:
        key, kx, kp = jax.random.split(key, 3)
        x = jax.random.normal(kx, (N, Cin, L), jnp.float32)
        params = make_params(kp, Cin, Cout)

        out = jax.block_until_ready(
            residual_block(x, params, compute_dtype=cdt, max_tile=max_tile))
        ref = jax.block_until_ready(ref_forward(x, params))

        assert out.shape == (N, Cout, L), (out.shape, (N, Cout, L))
        err = float(jnp.max(jnp.abs(out - ref)))
        assert err <= tol, ((N, Cin, Cout, L, str(cdt)), err)

    print("KERNEL_OK")
</pallas_src>

<mosaic_0001>
module attributes {stable_mosaic.version = 11 : i64} {
  func.func @_rb_masked_kernel(%arg0: i32, %arg1: memref<1x32xi32, #tpu.memory_space<vmem>>, %arg2: memref<4x32xf32, #tpu.memory_space<vmem>>, %arg3: memref<3x8x4xf32, #tpu.memory_space<vmem>>, %arg4: memref<8x1xf32, #tpu.memory_space<vmem>>, %arg5: memref<3x8x8xf32, #tpu.memory_space<vmem>>, %arg6: memref<8x1xf32, #tpu.memory_space<vmem>>, %arg7: memref<8x4xf32, #tpu.memory_space<vmem>>, %arg8: memref<8x1xf32, #tpu.memory_space<vmem>>, %arg9: memref<8x32xf32, #tpu.memory_space<vmem>>) attributes {dimension_semantics = [#tpu.dimension_semantics<parallel>], iteration_bounds = array<i64: 1>, scalar_prefetch = 0 : i64, scratch_operands = 0 : i64, tpu.core_type = #tpu.core_type<tc>, window_params = [{pipeline_mode = #tpu.pipeline_mode<synchronous>, transform_indices = @transform_0, window_bounds = array<i64: 1, 32>}, {transform_indices = @transform_1, window_bounds = array<i64: 4, 32>}, {pipeline_mode = #tpu.pipeline_mode<synchronous>, transform_indices = @transform_2, window_bounds = array<i64: 3, 8, 4>}, {pipeline_mode = #tpu.pipeline_mode<synchronous>, transform_indices = @transform_3, window_bounds = array<i64: 8, 1>}, {pipeline_mode = #tpu.pipeline_mode<synchronous>, transform_indices = @transform_4, window_bounds = array<i64: 3, 8, 8>}, {pipeline_mode = #tpu.pipeline_mode<synchronous>, transform_indices = @transform_5, window_bounds = array<i64: 8, 1>}, {pipeline_mode = #tpu.pipeline_mode<synchronous>, transform_indices = @transform_6, window_bounds = array<i64: 8, 4>}, {pipeline_mode = #tpu.pipeline_mode<synchronous>, transform_indices = @transform_7, window_bounds = array<i64: 8, 1>}, {transform_indices = @transform_8, window_bounds = array<i64: 8, 32>}]} {
    %c0 = arith.constant 0 : index
    %c0_0 = arith.constant 0 : index
    %0 = vector.load %arg2[%c0, %c0_0] : memref<4x32xf32, #tpu.memory_space<vmem>>, vector<4x32xf32>
    %c0_1 = arith.constant 0 : index
    %c0_2 = arith.constant 0 : index
    %1 = vector.load %arg1[%c0_1, %c0_2] : memref<1x32xi32, #tpu.memory_space<vmem>>, vector<1x32xi32>
    %c0_i32 = arith.constant 0 : i32
    %2 = vector.broadcast %c0_i32 : i32 to vector<1x32xi32>
    %3 = arith.cmpi eq, %1, %2 : vector<1x32xi32>
    %c15_i32 = arith.constant 15 : i32
    %4 = vector.broadcast %c15_i32 : i32 to vector<1x32xi32>
    %5 = arith.cmpi eq, %1, %4 : vector<1x32xi32>
    %cst = arith.constant 0.000000e+00 : f32
    %6 = vector.broadcast %cst : f32 to vector<4x1xf32>
    %7 = vector.extract_strided_slice %0 {offsets = [0, 0], sizes = [4, 1], strides = [1, 1]} : vector<4x32xf32> to vector<4x1xf32>
    %8 = vector.extract_strided_slice %0 {offsets = [0, 0], sizes = [4, 31], strides = [1, 1]} : vector<4x32xf32> to vector<4x31xf32>
    %9 = tpu.concatenate %7, %8 in 1 : vector<4x1xf32>, vector<4x31xf32> -> vector<4x32xf32>
    %10 = vector.shape_cast %3 : vector<1x32xi1> to vector<1x32xi1>
    %11 = vector.broadcast %10 : vector<1x32xi1> to vector<4x32xi1>
    %12 = vector.shape_cast %6 : vector<4x1xf32> to vector<4x1xf32>
    %13 = vector.broadcast %12 : vector<4x1xf32> to vector<4x32xf32>
    %14 = arith.select %11, %13, %9 : vector<4x32xi1>, vector<4x32xf32>
    %15 = vector.extract_strided_slice %0 {offsets = [0, 1], sizes = [4, 31], strides = [1, 1]} : vector<4x32xf32> to vector<4x31xf32>
    %16 = vector.extract_strided_slice %0 {offsets = [0, 31], sizes = [4, 1], strides = [1, 1]} : vector<4x32xf32> to vector<4x1xf32>
    %17 = tpu.concatenate %15, %16 in 1 : vector<4x31xf32>, vector<4x1xf32> -> vector<4x32xf32>
    %18 = vector.shape_cast %5 : vector<1x32xi1> to vector<1x32xi1>
    %19 = vector.broadcast %18 : vector<1x32xi1> to vector<4x32xi1>
    %20 = vector.shape_cast %6 : vector<4x1xf32> to vector<4x1xf32>
    %21 = vector.broadcast %20 : vector<4x1xf32> to vector<4x32xf32>
    %22 = arith.select %19, %21, %17 : vector<4x32xi1>, vector<4x32xf32>
    %c1 = arith.constant 1 : index
    %c0_3 = arith.constant 0 : index
    %c0_4 = arith.constant 0 : index
    %23 = vector.load %arg3[%c1, %c0_3, %c0_4] : memref<3x8x4xf32, #tpu.memory_space<vmem>>, vector<1x8x4xf32>
    %24 = vector.shape_cast %23 : vector<1x8x4xf32> to vector<8x4xf32>
    %cst_5 = arith.constant dense<0.000000e+00> : vector<8x32xf32>
    %25 = tpu.matmul %24, %0, %cst_5 {dimension_numbers = #tpu.dot_dimension_numbers<[1], [0], [0], [1], [0, 0, 1, 1], [], []>} : vector<8x4xf32>, vector<4x32xf32>, vector<8x32xf32> -> vector<8x32xf32>
    %c0_6 = arith.constant 0 : index
    %c0_7 = arith.constant 0 : index
    %c0_8 = arith.constant 0 : index
    %26 = vector.load %arg3[%c0_6, %c0_7, %c0_8] : memref<3x8x4xf32, #tpu.memory_space<vmem>>, vector<1x8x4xf32>
    %27 = vector.shape_cast %26 : vector<1x8x4xf32> to vector<8x4xf32>
    %cst_9 = arith.constant dense<0.000000e+00> : vector<8x32xf32>
    %28 = tpu.matmul %27, %14, %cst_9 {dimension_numbers = #tpu.dot_dimension_numbers<[1], [0], [0], [1], [0, 0, 1, 1], [], []>} : vector<8x4xf32>, vector<4x32xf32>, vector<8x32xf32> -> vector<8x32xf32>
    %29 = arith.addf %25, %28 : vector<8x32xf32>
    %c2 = arith.constant 2 : index
    %c0_10 = arith.constant 0 : index
    %c0_11 = arith.constant 0 : index
    %30 = vector.load %arg3[%c2, %c0_10, %c0_11] : memref<3x8x4xf32, #tpu.memory_space<vmem>>, vector<1x8x4xf32>
    %31 = vector.shape_cast %30 : vector<1x8x4xf32> to vector<8x4xf32>
    %cst_12 = arith.constant dense<0.000000e+00> : vector<8x32xf32>
    %32 = tpu.matmul %31, %22, %cst_12 {dimension_numbers = #tpu.dot_dimension_numbers<[1], [0], [0], [1], [0, 0, 1, 1], [], []>} : vector<8x4xf32>, vector<4x32xf32>, vector<8x32xf32> -> vector<8x32xf32>
    %33 = arith.addf %29, %32 : vector<8x32xf32>
    %c0_13 = arith.constant 0 : index
    %c0_14 = arith.constant 0 : index
    %34 = vector.load %arg4[%c0_13, %c0_14] : memref<8x1xf32, #tpu.memory_space<vmem>>, vector<8x1xf32>
    %35 = vector.broadcast %34 : vector<8x1xf32> to vector<8x32xf32>
    %36 = arith.addf %33, %35 : vector<8x32xf32>
    %cst_15 = arith.constant 0.000000e+00 : f32
    %37 = vector.broadcast %cst_15 : f32 to vector<8x32xf32>
    %38 = arith.maximumf %36, %37 : vector<8x32xf32>
    %cst_16 = arith.constant 0.000000e+00 : f32
    %39 = vector.broadcast %cst_16 : f32 to vector<8x1xf32>
    %40 = vector.extract_strided_slice %38 {offsets = [0, 0], sizes = [8, 1], strides = [1, 1]} : vector<8x32xf32> to vector<8x1xf32>
    %41 = vector.extract_strided_slice %38 {offsets = [0, 0], sizes = [8, 31], strides = [1, 1]} : vector<8x32xf32> to vector<8x31xf32>
    %42 = tpu.concatenate %40, %41 in 1 : vector<8x1xf32>, vector<8x31xf32> -> vector<8x32xf32>
    %43 = vector.shape_cast %3 : vector<1x32xi1> to vector<1x32xi1>
    %44 = vector.broadcast %43 : vector<1x32xi1> to vector<8x32xi1>
    %45 = vector.shape_cast %39 : vector<8x1xf32> to vector<8x1xf32>
    %46 = vector.broadcast %45 : vector<8x1xf32> to vector<8x32xf32>
    %47 = arith.select %44, %46, %42 : vector<8x32xi1>, vector<8x32xf32>
    %48 = vector.extract_strided_slice %38 {offsets = [0, 1], sizes = [8, 31], strides = [1, 1]} : vector<8x32xf32> to vector<8x31xf32>
    %49 = vector.extract_strided_slice %38 {offsets = [0, 31], sizes = [8, 1], strides = [1, 1]} : vector<8x32xf32> to vector<8x1xf32>
    %50 = tpu.concatenate %48, %49 in 1 : vector<8x31xf32>, vector<8x1xf32> -> vector<8x32xf32>
    %51 = vector.shape_cast %5 : vector<1x32xi1> to vector<1x32xi1>
    %52 = vector.broadcast %51 : vector<1x32xi1> to vector<8x32xi1>
    %53 = vector.shape_cast %39 : vector<8x1xf32> to vector<8x1xf32>
    %54 = vector.broadcast %53 : vector<8x1xf32> to vector<8x32xf32>
    %55 = arith.select %52, %54, %50 : vector<8x32xi1>, vector<8x32xf32>
    %c1_17 = arith.constant 1 : index
    %c0_18 = arith.constant 0 : index
    %c0_19 = arith.constant 0 : index
    %56 = vector.load %arg5[%c1_17, %c0_18, %c0_19] : memref<3x8x8xf32, #tpu.memory_space<vmem>>, vector<1x8x8xf32>
    %57 = vector.shape_cast %56 : vector<1x8x8xf32> to vector<8x8xf32>
    %cst_20 = arith.constant dense<0.000000e+00> : vector<8x32xf32>
    %58 = tpu.matmul %57, %38, %cst_20 {dimension_numbers = #tpu.dot_dimension_numbers<[1], [0], [0], [1], [0, 0, 1, 1], [], []>} : vector<8x8xf32>, vector<8x32xf32>, vector<8x32xf32> -> vector<8x32xf32>
    %c0_21 = arith.constant 0 : index
    %c0_22 = arith.constant 0 : index
    %c0_23 = arith.constant 0 : index
    %59 = vector.load %arg5[%c0_21, %c0_22, %c0_23] : memref<3x8x8xf32, #tpu.memory_space<vmem>>, vector<1x8x8xf32>
    %60 = vector.shape_cast %59 : vector<1x8x8xf32> to vector<8x8xf32>
    %cst_24 = arith.constant dense<0.000000e+00> : vector<8x32xf32>
    %61 = tpu.matmul %60, %47, %cst_24 {dimension_numbers = #tpu.dot_dimension_numbers<[1], [0], [0], [1], [0, 0, 1, 1], [], []>} : vector<8x8xf32>, vector<8x32xf32>, vector<8x32xf32> -> vector<8x32xf32>
    %62 = arith.addf %58, %61 : vector<8x32xf32>
    %c2_25 = arith.constant 2 : index
    %c0_26 = arith.constant 0 : index
    %c0_27 = arith.constant 0 : index
    %63 = vector.load %arg5[%c2_25, %c0_26, %c0_27] : memref<3x8x8xf32, #tpu.memory_space<vmem>>, vector<1x8x8xf32>
    %64 = vector.shape_cast %63 : vector<1x8x8xf32> to vector<8x8xf32>
    %cst_28 = arith.constant dense<0.000000e+00> : vector<8x32xf32>
    %65 = tpu.matmul %64, %55, %cst_28 {dimension_numbers = #tpu.dot_dimension_numbers<[1], [0], [0], [1], [0, 0, 1, 1], [], []>} : vector<8x8xf32>, vector<8x32xf32>, vector<8x32xf32> -> vector<8x32xf32>
    %66 = arith.addf %62, %65 : vector<8x32xf32>
    %c0_29 = arith.constant 0 : index
    %c0_30 = arith.constant 0 : index
    %67 = vector.load %arg6[%c0_29, %c0_30] : memref<8x1xf32, #tpu.memory_space<vmem>>, vector<8x1xf32>
    %68 = vector.broadcast %67 : vector<8x1xf32> to vector<8x32xf32>
    %69 = arith.addf %66, %68 : vector<8x32xf32>
    %c0_31 = arith.constant 0 : index
    %c0_32 = arith.constant 0 : index
    %70 = vector.load %arg7[%c0_31, %c0_32] : memref<8x4xf32, #tpu.memory_space<vmem>>, vector<8x4xf32>
    %cst_33 = arith.constant dense<0.000000e+00> : vector<8x32xf32>
    %71 = tpu.matmul %70, %0, %cst_33 {dimension_numbers = #tpu.dot_dimension_numbers<[1], [0], [0], [1], [0, 0, 1, 1], [], []>} : vector<8x4xf32>, vector<4x32xf32>, vector<8x32xf32> -> vector<8x32xf32>
    %c0_34 = arith.constant 0 : index
    %c0_35 = arith.constant 0 : index
    %72 = vector.load %arg8[%c0_34, %c0_35] : memref<8x1xf32, #tpu.memory_space<vmem>>, vector<8x1xf32>
    %73 = vector.broadcast %72 : vector<8x1xf32> to vector<8x32xf32>
    %74 = arith.addf %71, %73 : vector<8x32xf32>
    %75 = arith.addf %69, %74 : vector<8x32xf32>
    %cst_36 = arith.constant 0.000000e+00 : f32
    %76 = vector.broadcast %cst_36 : f32 to vector<8x32xf32>
    %77 = arith.maximumf %75, %76 : vector<8x32xf32>
    %c0_37 = arith.constant 0 : index
    %c0_38 = arith.constant 0 : index
    %78 = vector.load %arg9[%c0_37, %c0_38] : memref<8x32xf32, #tpu.memory_space<vmem>>, vector<8x32xf32>
    tpu.vector_store %arg9[%c0_37, %c0_38], %77 {strides = array<i32>} : memref<8x32xf32, #tpu.memory_space<vmem>>, vector<8x32xf32>,
    return
  }
  func.func @transform_0(%arg0: i32) -> (i32, i32) {
    %c0_i32 = arith.constant 0 : i32
    %c0_i32_0 = arith.constant 0 : i32
    %c0_i32_1 = arith.constant 0 : i32
    return %c0_i32, %c0_i32_0 : i32, i32
  }
  func.func @transform_1(%arg0: i32) -> (i32, i32) {
    %c0_i32 = arith.constant 0 : i32
    %c0_i32_0 = arith.constant 0 : i32
    return %c0_i32, %arg0 : i32, i32
  }
  func.func @transform_2(%arg0: i32) -> (i32, i32, i32) {
    %c0_i32 = arith.constant 0 : i32
    %c0_i32_0 = arith.constant 0 : i32
    %c0_i32_1 = arith.constant 0 : i32
    %c0_i32_2 = arith.constant 0 : i32
    return %c0_i32, %c0_i32_0, %c0_i32_1 : i32, i32, i32
  }
  func.func @transform_3(%arg0: i32) -> (i32, i32) {
    %c0_i32 = arith.constant 0 : i32
    %c0_i32_0 = arith.constant 0 : i32
    %c0_i32_1 = arith.constant 0 : i32
    return %c0_i32, %c0_i32_0 : i32, i32
  }
  func.func @transform_4(%arg0: i32) -> (i32, i32, i32) {
    %c0_i32 = arith.constant 0 : i32
    %c0_i32_0 = arith.constant 0 : i32
    %c0_i32_1 = arith.constant 0 : i32
    %c0_i32_2 = arith.constant 0 : i32
    return %c0_i32, %c0_i32_0, %c0_i32_1 : i32, i32, i32
  }
  func.func @transform_5(%arg0: i32) -> (i32, i32) {
    %c0_i32 = arith.constant 0 : i32
    %c0_i32_0 = arith.constant 0 : i32
    %c0_i32_1 = arith.constant 0 : i32
    return %c0_i32, %c0_i32_0 : i32, i32
  }
  func.func @transform_6(%arg0: i32) -> (i32, i32) {
    %c0_i32 = arith.constant 0 : i32
    %c0_i32_0 = arith.constant 0 : i32
    %c0_i32_1 = arith.constant 0 : i32
    return %c0_i32, %c0_i32_0 : i32, i32
  }
  func.func @transform_7(%arg0: i32) -> (i32, i32) {
    %c0_i32 = arith.constant 0 : i32
    %c0_i32_0 = arith.constant 0 : i32
    %c0_i32_1 = arith.constant 0 : i32
    return %c0_i32, %c0_i32_0 : i32, i32
  }
  func.func @transform_8(%arg0: i32) -> (i32, i32) {
    %c0_i32 = arith.constant 0 : i32
    %c0_i32_0 = arith.constant 0 : i32
    return %c0_i32, %arg0 : i32, i32
  }
}

</mosaic_0001>

<llo_original>
// kernel: tpu_custom_call.1
$region0: #{tpu_custom_call.1}
  #allocation0 [shape = 'u32[]', space=smem, size = 0x4, offset = 0x4, fixed_abs, tag = 'smem constant byte address 0x4 - core index']
  #allocation1 [shape = 'u32[144,128]{1,0:T(1,128)}', space=vmem, size = 0x12000, scoped, tag = 'internal scratch']
  %s0 = inlined_call_operand.vmem [shape: s32[1,32], index: 0, kind: input, shape index: {}]
  %s1 = inlined_call_operand.vmem [shape: f32[4,32], index: 1, kind: input, shape index: {}]
  %s2 = inlined_call_operand.vmem [shape: f32[3,8,4], index: 2, kind: input, shape index: {}]
  %s3 = inlined_call_operand.vmem [shape: f32[8,1], index: 3, kind: input, shape index: {}]
  %s4 = inlined_call_operand.vmem [shape: f32[3,8,8], index: 4, kind: input, shape index: {}]
  %s5 = inlined_call_operand.vmem [shape: f32[8,1], index: 5, kind: input, shape index: {}]
  %s6 = inlined_call_operand.vmem [shape: f32[8,4], index: 6, kind: input, shape index: {}]
  %s7 = inlined_call_operand.vmem [shape: f32[8,1], index: 7, kind: input, shape index: {}]
  %s8 = inlined_call_operand.hbm [shape: f32[8,32], index: 8, kind: output, shape index: {}]
  %s9 = sld [smem:[#allocation0]]
  $region42: #{tpu_custom_call.1} parent=0
    _
  %s11 = ssub.s32 1, %s9
  %s12 = scalar_select 0, %s11, %s9
  $region1: #{tpu_custom_call.1} parent=0
    #allocation2 [shape = 'u8[4096]{0}', space=vmem, size = 0x1000, scoped, tag = 'output window, operand 0, single buffered']
    #allocation3 [shape = 's32[1]{0}', space=sflag, size = 0x4, scoped, tag = 'scoped memory for tpu_custom_call.1']
    %13 = vsyncpa [#allocation3], 0
    // Predicated region
    $region2: #{tpu_custom_call.1} parent=1 // pred_check
      _
    $region3: #{tpu_custom_call.1} parent=1 // pred_check_branch
      %15 = sbr.rel (0) target = $region5
    $region4: #{tpu_custom_call.1} parent=1 // pred_region
      _
    $region5: #{tpu_custom_call.1} parent=1 // pred_fallthru
      _
    // Predicated region
    $region6: #{tpu_custom_call.1} parent=1 // pred_check
      _
    $region7: #{tpu_custom_call.1} parent=1 // pred_check_branch
      %17 = sbr.rel (0) target = $region9
    $region8: #{tpu_custom_call.1} parent=1 // pred_region
      _
    $region9: #{tpu_custom_call.1} parent=1 // pred_fallthru
      _
    // Predicated region
    $region10: #{tpu_custom_call.1} parent=1 // pred_check
      _
    $region11: #{tpu_custom_call.1} parent=1 // pred_check_branch
      %19 = sbr.rel (0) target = $region13
    $region12: #{tpu_custom_call.1} parent=1 // pred_region
      _
    $region13: #{tpu_custom_call.1} parent=1 // pred_fallthru
      _
    // Predicated region
    $region14: #{tpu_custom_call.1} parent=1 // pred_check
      _
    $region15: #{tpu_custom_call.1} parent=1 // pred_check_branch
      %21 = sbr.rel (0) target = $region17
    $region16: #{tpu_custom_call.1} parent=1 // pred_region
      _
    $region17: #{tpu_custom_call.1} parent=1 // pred_fallthru
      _
    // Predicated region
    $region18: #{tpu_custom_call.1} parent=1 // pred_check
      _
    $region19: #{tpu_custom_call.1} parent=1 // pred_check_branch
      %23 = sbr.rel (0) target = $region21
    $region20: #{tpu_custom_call.1} parent=1 // pred_region
      _
    $region21: #{tpu_custom_call.1} parent=1 // pred_fallthru
      _
    // Predicated region
    $region22: #{tpu_custom_call.1} parent=1 // pred_check
      _
    $region23: #{tpu_custom_call.1} parent=1 // pred_check_branch
      %25 = sbr.rel (0) target = $region25
    $region24: #{tpu_custom_call.1} parent=1 // pred_region
      _
    $region25: #{tpu_custom_call.1} parent=1 // pred_fallthru
      _
    // Predicated region
    $region26: #{tpu_custom_call.1} parent=1 // pred_check
      _
    $region27: #{tpu_custom_call.1} parent=1 // pred_check_branch
      %27 = sbr.rel (0) target = $region29
    $region28: #{tpu_custom_call.1} parent=1 // pred_region
      _
    $region29: #{tpu_custom_call.1} parent=1 // pred_fallthru
      _
    // Predicated region
    $region30: #{tpu_custom_call.1} parent=1 // pred_check
      _
    $region31: #{tpu_custom_call.1} parent=1 // pred_check_branch
      %29 = sbr.rel (0) target = $region33
    $region32: #{tpu_custom_call.1} parent=1 // pred_region
      _
    $region33: #{tpu_custom_call.1} parent=1 // pred_fallthru
      _
    %v30 = vld [vmem:[%s1] sm:$0xf]
    %v31 = vld [vmem:[%s0] sm:$0x1]
    %vm32 = vcmp.eq.s32.totalorder %v31, 0
    %vm33 = vcmp.eq.s32.totalorder %v31, 15
    %35 = vrot.lane.b32.xlu0 %v30, 1
    %v36 = vpop.permute.xlu0 %35
    %vm38 = vcmask 7168
    %v39 = vsel %vm38, %v30, %v36
    %v40 = vsel %vm32, 1, 0
    %v41 = vlaneseq
    %v42 = vshrl.u32 %v41, 7
    %v43 = vsub.s32 0, %v42
    %v44 = vrot.slane %v40, %v43
    %vm45 = vcmp.eq.s32.totalorder %v44, 1
    %v46 = vsel %vm45, 0.0, %v39
    %47 = vrot.lane.b32.xlu0 %v30, 127
    %v48 = vpop.permute.xlu0 %47
    %vm50 = vcmask 252928
    %v51 = vsel %vm50, %v48, %v30
    %v52 = vsel %vm33, 1, 0
    %v53 = vlaneseq
    %v54 = vshrl.u32 %v53, 7
    %v55 = vsub.s32 0, %v54
    %v56 = vrot.slane %v52, %v55
    %vm57 = vcmp.eq.s32.totalorder %v56, 1
    %v58 = vsel %vm57, 0.0, %v51
    %s59 = scalar_lea.vmem %s2, 8
    %v60 = vld [vmem:[%s59] sm:$0xff]
    %v61 = vld [vmem:[%s2] sm:$0xff]
    %vm62 = vcmask 31744
    %v64 = vsel %vm62, %v61, 0
    %vm66 = vcmask 1043456
    %v68 = vsel %vm66, %v46, 0
    %70 = vmatprep.subr.mxu0 0.0
    %71 = vmatpush1.msra.mxu0 %v68
    %72 = vmatprep.subr.mxu0 0.0
    %73 = vmatpush1.msra.mxu0 0.0
    %74 = vmatprep.subr.mxu0 0.0
    %75 = vmatpush1.msra.mxu0 0.0
    %76 = vmatprep.subr.mxu0 0.0
    %77 = vmatpush1.msra.mxu0 0.0
    %78 = vmatprep.subr.mxu0 0.0
    %79 = vmatpush1.msra.mxu0 0.0
    %80 = vmatprep.subr.mxu0 0.0
    %81 = vmatpush1.msra.mxu0 0.0
    %82 = vmatprep.subr.mxu0 0.0
    %83 = vmatpush1.msra.mxu0 0.0
    %84 = vmatprep.subr.mxu0 0.0
    %85 = vmatpush1.msra.mxu0 0.0
    %86 = vmatprep.subr.mxu0 0.0
    %87 = vmatpush1.msra.mxu0 0.0
    %88 = vmatprep.subr.mxu0 0.0
    %89 = vmatpush1.msra.mxu0 0.0
    %90 = vmatprep.subr.mxu0 0.0
    %91 = vmatpush1.msra.mxu0 0.0
    %92 = vmatprep.subr.mxu0 0.0
    %93 = vmatpush1.msra.mxu0 0.0
    %94 = vmatprep.subr.mxu0 0.0
    %95 = vmatpush1.msra.mxu0 0.0
    %96 = vmatprep.subr.mxu0 0.0
    %97 = vmatpush1.msra.mxu0 0.0
    %98 = vmatprep.subr.mxu0 0.0
    %99 = vmatpush1.msra.mxu0 0.0
    %100 = vmatprep.subr.mxu0 0.0
    %101 = vmatpush1.msra.mxu0 0.0
    %102 = vmatprep.subr.mxu0 0.0
    %103 = vmatpush1.msra.mxu0 0.0
    %104 = vmatprep.subr.mxu0 0.0
    %105 = vmatpush1.msra.mxu0 0.0
    %106 = vmatprep.subr.mxu0 0.0
    %107 = vmatpush1.msra.mxu0 0.0
    %108 = vmatprep.subr.mxu0 0.0
    %109 = vmatpush1.msra.mxu0 0.0
    %110 = vmatprep.subr.mxu0 0.0
    %111 = vmatpush1.msra.mxu0 0.0
    %112 = vmatprep.subr.mxu0 0.0
    %113 = vmatpush1.msra.mxu0 0.0
    %114 = vmatprep.subr.mxu0 0.0
    %115 = vmatpush1.msra.mxu0 0.0
    %116 = vmatprep.subr.mxu0 0.0
    %117 = vmatpush1.msra.mxu0 0.0
    %118 = vmatprep.subr.mxu0 0.0
    %119 = vmatpush1.msra.mxu0 0.0
    %120 = vmatprep.subr.mxu0 0.0
    %121 = vmatpush1.msra.mxu0 0.0
    %122 = vmatprep.subr.mxu0 0.0
    %123 = vmatpush1.msra.mxu0 0.0
    %124 = vmatprep.subr.mxu0 0.0
    %125 = vmatpush1.msra.mxu0 0.0
    %126 = vmatprep.subr.mxu0 0.0
    %127 = vmatpush1.msra.mxu0 0.0
    %128 = vmatprep.subr.mxu0 0.0
    %129 = vmatpush1.msra.mxu0 0.0
    %130 = vmatprep.subr.mxu0 0.0
    %131 = vmatpush1.msra.mxu0 0.0
    %132 = vmatprep.subr.mxu0 0.0
    %133 = vmatpush1.msra.mxu0 0.0
    %134 = vmatprep.mubr.f32.mxu0 0.0
    %135 = vmatmul.mubr.f32.gmra.mrb[0].mxu0 %v64
    %v136 = vpop.f32.mrb[0].mxu0
    %v137 = vadd.f32 0.0, %v136
    %v138 = vpop.f32.mrb[0].mxu0
    %139 = vdwg.mxu0
    %v141 = vsel %vm62, %v60, 0
    %v143 = vsel %vm66, %v30, 0
    %145 = vmatprep.subr.mxu0 0.0
    %146 = vmatpush1.msra.mxu0 %v143
    %147 = vmatprep.subr.mxu0 0.0
    %148 = vmatpush1.msra.mxu0 0.0
    %149 = vmatprep.subr.mxu0 0.0
    %150 = vmatpush1.msra.mxu0 0.0
    %151 = vmatprep.subr.mxu0 0.0
    %152 = vmatpush1.msra.mxu0 0.0
    %153 = vmatprep.subr.mxu0 0.0
    %154 = vmatpush1.msra.mxu0 0.0
    %155 = vmatprep.subr.mxu0 0.0
    %156 = vmatpush1.msra.mxu0 0.0
    %157 = vmatprep.subr.mxu0 0.0
    %158 = vmatpush1.msra.mxu0 0.0
    %159 = vmatprep.subr.mxu0 0.0
    %160 = vmatpush1.msra.mxu0 0.0
    %161 = vmatprep.subr.mxu0 0.0
    %162 = vmatpush1.msra.mxu0 0.0
    %163 = vmatprep.subr.mxu0 0.0
    %164 = vmatpush1.msra.mxu0 0.0
    %165 = vmatprep.subr.mxu0 0.0
    %166 = vmatpush1.msra.mxu0 0.0
    %167 = vmatprep.subr.mxu0 0.0
    %168 = vmatpush1.msra.mxu0 0.0
    %169 = vmatprep.subr.mxu0 0.0
    %170 = vmatpush1.msra.mxu0 0.0
    %171 = vmatprep.subr.mxu0 0.0
    %172 = vmatpush1.msra.mxu0 0.0
    %173 = vmatprep.subr.mxu0 0.0
    %174 = vmatpush1.msra.mxu0 0.0
    %175 = vmatprep.subr.mxu0 0.0
    %176 = vmatpush1.msra.mxu0 0.0
    %177 = vmatprep.subr.mxu0 0.0
    %178 = vmatpush1.msra.mxu0 0.0
    %179 = vmatprep.subr.mxu0 0.0
    %180 = vmatpush1.msra.mxu0 0.0
    %181 = vmatprep.subr.mxu0 0.0
    %182 = vmatpush1.msra.mxu0 0.0
    %183 = vmatprep.subr.mxu0 0.0
    %184 = vmatpush1.msra.mxu0 0.0
    %185 = vmatprep.subr.mxu0 0.0
    %186 = vmatpush1.msra.mxu0 0.0
    %187 = vmatprep.subr.mxu0 0.0
    %188 = vmatpush1.msra.mxu0 0.0
    %189 = vmatprep.subr.mxu0 0.0
    %190 = vmatpush1.msra.mxu0 0.0
    %191 = vmatprep.subr.mxu0 0.0
    %192 = vmatpush1.msra.mxu0 0.0
    %193 = vmatprep.subr.mxu0 0.0
    %194 = vmatpush1.msra.mxu0 0.0
    %195 = vmatprep.subr.mxu0 0.0
    %196 = vmatpush1.msra.mxu0 0.0
    %197 = vmatprep.subr.mxu0 0.0
    %198 = vmatpush1.msra.mxu0 0.0
    %199 = vmatprep.subr.mxu0 0.0
    %200 = vmatpush1.msra.mxu0 0.0
    %201 = vmatprep.subr.mxu0 0.0
    %202 = vmatpush1.msra.mxu0 0.0
    %203 = vmatprep.subr.mxu0 0.0
    %204 = vmatpush1.msra.mxu0 0.0
    %205 = vmatprep.subr.mxu0 0.0
    %206 = vmatpush1.msra.mxu0 0.0
    %207 = vmatprep.subr.mxu0 0.0
    %208 = vmatpush1.msra.mxu0 0.0
    %209 = vmatprep.mubr.f32.mxu0 0.0
    %210 = vmatmul.mubr.f32.gmra.mrb[0].mxu0 %v141
    %v211 = vpop.f32.mrb[0].mxu0
    %v212 = vadd.f32 %v137, %v211
    %v213 = vpop.f32.mrb[0].mxu0
    %214 = vdwg.mxu0
    %s215 = scalar_lea.vmem %s2, 16
    %v216 = vld [vmem:[%s215] sm:$0xff]
    %v218 = vsel %vm62, %v216, 0
    %v221 = vsel %vm66, %v58, 0
    %223 = vmatprep.subr.mxu0 0.0
    %224 = vmatpush1.msra.mxu0 %v221
    %225 = vmatprep.subr.mxu0 0.0
    %226 = vmatpush1.msra.mxu0 0.0
    %227 = vmatprep.subr.mxu0 0.0
    %228 = vmatpush1.msra.mxu0 0.0
    %229 = vmatprep.subr.mxu0 0.0
    %230 = vmatpush1.msra.mxu0 0.0
    %231 = vmatprep.subr.mxu0 0.0
    %232 = vmatpush1.msra.mxu0 0.0
    %233 = vmatprep.subr.mxu0 0.0
    %234 = vmatpush1.msra.mxu0 0.0
    %235 = vmatprep.subr.mxu0 0.0
    %236 = vmatpush1.msra.mxu0 0.0
    %237 = vmatprep.subr.mxu0 0.0
    %238 = vmatpush1.msra.mxu0 0.0
    %239 = vmatprep.subr.mxu0 0.0
    %240 = vmatpush1.msra.mxu0 0.0
    %241 = vmatprep.subr.mxu0 0.0
    %242 = vmatpush1.msra.mxu0 0.0
    %243 = vmatprep.subr.mxu0 0.0
    %244 = vmatpush1.msra.mxu0 0.0
    %245 = vmatprep.subr.mxu0 0.0
    %246 = vmatpush1.msra.mxu0 0.0
    %247 = vmatprep.subr.mxu0 0.0
    %248 = vmatpush1.msra.mxu0 0.0
    %249 = vmatprep.subr.mxu0 0.0
    %250 = vmatpush1.msra.mxu0 0.0
    %251 = vmatprep.subr.mxu0 0.0
    %252 = vmatpush1.msra.mxu0 0.0
    %253 = vmatprep.subr.mxu0 0.0
    %254 = vmatpush1.msra.mxu0 0.0
    %255 = vmatprep.subr.mxu0 0.0
    %256 = vmatpush1.msra.mxu0 0.0
    %257 = vmatprep.subr.mxu0 0.0
    %258 = vmatpush1.msra.mxu0 0.0
    %259 = vmatprep.subr.mxu0 0.0
    %260 = vmatpush1.msra.mxu0 0.0
    %261 = vmatprep.subr.mxu0 0.0
    %262 = vmatpush1.msra.mxu0 0.0
    %263 = vmatprep.subr.mxu0 0.0
    %264 = vmatpush1.msra.mxu0 0.0
    %265 = vmatprep.subr.mxu0 0.0
    %266 = vmatpush1.msra.mxu0 0.0
    %267 = vmatprep.subr.mxu0 0.0
    %268 = vmatpush1.msra.mxu0 0.0
    %269 = vmatprep.subr.mxu0 0.0
    %270 = vmatpush1.msra.mxu0 0.0
    %271 = vmatprep.subr.mxu0 0.0
    %272 = vmatpush1.msra.mxu0 0.0
    %273 = vmatprep.subr.mxu0 0.0
    %274 = vmatpush1.msra.mxu0 0.0
    %275 = vmatprep.subr.mxu0 0.0
    %276 = vmatpush1.msra.mxu0 0.0
    %277 = vmatprep.subr.mxu0 0.0
    %278 = vmatpush1.msra.mxu0 0.0
    %279 = vmatprep.subr.mxu0 0.0
    %280 = vmatpush1.msra.mxu0 0.0
    %281 = vmatprep.subr.mxu0 0.0
    %282 = vmatpush1.msra.mxu0 0.0
    %283 = vmatprep.subr.mxu0 0.0
    %284 = vmatpush1.msra.mxu0 0.0
    %285 = vmatprep.subr.mxu0 0.0
    %286 = vmatpush1.msra.mxu0 0.0
    %287 = vmatprep.mubr.f32.mxu0 0.0
    %288 = vmatmul.mubr.f32.gmra.mrb[0].mxu0 %v218
    %v289 = vpop.f32.mrb[0].mxu0
    %v290 = vadd.f32 0.0, %v289
    %v291 = vpop.f32.mrb[0].mxu0
    %292 = vdwg.mxu0
    %v293 = vadd.f32 %v212, %v290
    %v294 = vld [vmem:[%s3] sm:$0xff]
    %296 = vset.pattern.permute.xlu0 0
    %297 = vperm.xlu0 %296, %v294
    %v298 = vpop.permute.xlu0 %297
    %v300 = vadd.f32 %v293, %v298
    %v301 = vmax.f32 %v300, 0.0
    %303 = vrot.lane.b32.xlu0 %v301, 1
    %v304 = vpop.permute.xlu0 %303
    %v306 = vsel %vm38, %v301, %v304
    %v307 = vsel %vm45, 0.0, %v306
    %308 = vrot.lane.b32.xlu0 %v301, 127
    %v309 = vpop.permute.xlu0 %308
    %v311 = vsel %vm50, %v309, %v301
    %v312 = vsel %vm57, 0.0, %v311
    %s313 = scalar_lea.vmem %s4, 8
    %v314 = vld [vmem:[%s313] sm:$0xff]
    %v315 = vld [vmem:[%s4] sm:$0xff]
    %vm316 = vcmask 64512
    %v318 = vsel %vm316, %v315, 0
    %320 = vmatprep.subr.mxu0 0.0
    %321 = vmatpush1.msra.mxu0 %v307
    %322 = vmatprep.subr.mxu0 0.0
    %323 = vmatpush1.msra.mxu0 0.0
    %324 = vmatprep.subr.mxu0 0.0
    %325 = vmatpush1.msra.mxu0 0.0
    %326 = vmatprep.subr.mxu0 0.0
    %327 = vmatpush1.msra.mxu0 0.0
    %328 = vmatprep.subr.mxu0 0.0
    %329 = vmatpush1.msra.mxu0 0.0
    %330 = vmatprep.subr.mxu0 0.0
    %331 = vmatpush1.msra.mxu0 0.0
    %332 = vmatprep.subr.mxu0 0.0
    %333 = vmatpush1.msra.mxu0 0.0
    %334 = vmatprep.subr.mxu0 0.0
    %335 = vmatpush1.msra.mxu0 0.0
    %336 = vmatprep.subr.mxu0 0.0
    %337 = vmatpush1.msra.mxu0 0.0
    %338 = vmatprep.subr.mxu0 0.0
    %339 = vmatpush1.msra.mxu0 0.0
    %340 = vmatprep.subr.mxu0 0.0
    %341 = vmatpush1.msra.mxu0 0.0
    %342 = vmatprep.subr.mxu0 0.0
    %343 = vmatpush1.msra.mxu0 0.0
    %344 = vmatprep.subr.mxu0 0.0
    %345 = vmatpush1.msra.mxu0 0.0
    %346 = vmatprep.subr.mxu0 0.0
    %347 = vmatpush1.msra.mxu0 0.0
    %348 = vmatprep.subr.mxu0 0.0
    %349 = vmatpush1.msra.mxu0 0.0
    %350 = vmatprep.subr.mxu0 0.0
    %351 = vmatpush1.msra.mxu0 0.0
    %352 = vmatprep.subr.mxu0 0.0
    %353 = vmatpush1.msra.mxu0 0.0
    %354 = vmatprep.subr.mxu0 0.0
    %355 = vmatpush1.msra.mxu0 0.0
    %356 = vmatprep.subr.mxu0 0.0
    %357 = vmatpush1.msra.mxu0 0.0
    %358 = vmatprep.subr.mxu0 0.0
    %359 = vmatpush1.msra.mxu0 0.0
    %360 = vmatprep.subr.mxu0 0.0
    %361 = vmatpush1.msra.mxu0 0.0
    %362 = vmatprep.subr.mxu0 0.0
    %363 = vmatpush1.msra.mxu0 0.0
    %364 = vmatprep.subr.mxu0 0.0
    %365 = vmatpush1.msra.mxu0 0.0
    %366 = vmatprep.subr.mxu0 0.0
    %367 = vmatpush1.msra.mxu0 0.0
    %368 = vmatprep.subr.mxu0 0.0
    %369 = vmatpush1.msra.mxu0 0.0
    %370 = vmatprep.subr.mxu0 0.0
    %371 = vmatpush1.msra.mxu0 0.0
    %372 = vmatprep.subr.mxu0 0.0
    %373 = vmatpush1.msra.mxu0 0.0
    %374 = vmatprep.subr.mxu0 0.0
    %375 = vmatpush1.msra.mxu0 0.0
    %376 = vmatprep.subr.mxu0 0.0
    %377 = vmatpush1.msra.mxu0 0.0
    %378 = vmatprep.subr.mxu0 0.0
    %379 = vmatpush1.msra.mxu0 0.0
    %380 = vmatprep.subr.mxu0 0.0
    %381 = vmatpush1.msra.mxu0 0.0
    %382 = vmatprep.subr.mxu0 0.0
    %383 = vmatpush1.msra.mxu0 0.0
    %384 = vmatprep.mubr.f32.mxu0 0.0
    %385 = vmatmul.mubr.f32.gmra.mrb[0].mxu0 %v318
    %v386 = vpop.f32.mrb[0].mxu0
    %v387 = vadd.f32 0.0, %v386
    %v388 = vpop.f32.mrb[0].mxu0
    %389 = vdwg.mxu0
    %v391 = vsel %vm316, %v314, 0
    %393 = vmatprep.subr.mxu0 0.0
    %394 = vmatpush1.msra.mxu0 %v301
    %395 = vmatprep.subr.mxu0 0.0
    %396 = vmatpush1.msra.mxu0 0.0
    %397 = vmatprep.subr.mxu0 0.0
    %398 = vmatpush1.msra.mxu0 0.0
    %399 = vmatprep.subr.mxu0 0.0
    %400 = vmatpush1.msra.mxu0 0.0
    %401 = vmatprep.subr.mxu0 0.0
    %402 = vmatpush1.msra.mxu0 0.0
    %403 = vmatprep.subr.mxu0 0.0
    %404 = vmatpush1.msra.mxu0 0.0
    %405 = vmatprep.subr.mxu0 0.0
    %406 = vmatpush1.msra.mxu0 0.0
    %407 = vmatprep.subr.mxu0 0.0
    %408 = vmatpush1.msra.mxu0 0.0
    %409 = vmatprep.subr.mxu0 0.0
    %410 = vmatpush1.msra.mxu0 0.0
    %411 = vmatprep.subr.mxu0 0.0
    %412 = vmatpush1.msra.mxu0 0.0
    %413 = vmatprep.subr.mxu0 0.0
    %414 = vmatpush1.msra.mxu0 0.0
    %415 = vmatprep.subr.mxu0 0.0
    %416 = vmatpush1.msra.mxu0 0.0
    %417 = vmatprep.subr.mxu0 0.0
    %418 = vmatpush1.msra.mxu0 0.0
    %419 = vmatprep.subr.mxu0 0.0
    %420 = vmatpush1.msra.mxu0 0.0
    %421 = vmatprep.subr.mxu0 0.0
    %422 = vmatpush1.msra.mxu0 0.0
    %423 = vmatprep.subr.mxu0 0.0
    %424 = vmatpush1.msra.mxu0 0.0
    %425 = vmatprep.subr.mxu0 0.0
    %426 = vmatpush1.msra.mxu0 0.0
    %427 = vmatprep.subr.mxu0 0.0
    %428 = vmatpush1.msra.mxu0 0.0
    %429 = vmatprep.subr.mxu0 0.0
    %430 = vmatpush1.msra.mxu0 0.0
    %431 = vmatprep.subr.mxu0 0.0
    %432 = vmatpush1.msra.mxu0 0.0
    %433 = vmatprep.subr.mxu0 0.0
    %434 = vmatpush1.msra.mxu0 0.0
    %435 = vmatprep.subr.mxu0 0.0
    %436 = vmatpush1.msra.mxu0 0.0
    %437 = vmatprep.subr.mxu0 0.0
    %438 = vmatpush1.msra.mxu0 0.0
    %439 = vmatprep.subr.mxu0 0.0
    %440 = vmatpush1.msra.mxu0 0.0
    %441 = vmatprep.subr.mxu0 0.0
    %442 = vmatpush1.msra.mxu0 0.0
    %443 = vmatprep.subr.mxu0 0.0
    %444 = vmatpush1.msra.mxu0 0.0
    %445 = vmatprep.subr.mxu0 0.0
    %446 = vmatpush1.msra.mxu0 0.0
    %447 = vmatprep.subr.mxu0 0.0
    %448 = vmatpush1.msra.mxu0 0.0
    %449 = vmatprep.subr.mxu0 0.0
    %450 = vmatpush1.msra.mxu0 0.0
    %451 = vmatprep.subr.mxu0 0.0
    %452 = vmatpush1.msra.mxu0 0.0
    %453 = vmatprep.subr.mxu0 0.0
    %454 = vmatpush1.msra.mxu0 0.0
    %455 = vmatprep.subr.mxu0 0.0
    %456 = vmatpush1.msra.mxu0 0.0
    %457 = vmatprep.mubr.f32.mxu0 0.0
    %458 = vmatmul.mubr.f32.gmra.mrb[0].mxu0 %v391
    %v459 = vpop.f32.mrb[0].mxu0
    %v460 = vadd.f32 %v387, %v459
    %v461 = vpop.f32.mrb[0].mxu0
    %462 = vdwg.mxu0
    %s463 = scalar_lea.vmem %s4, 16
    %v464 = vld [vmem:[%s463] sm:$0xff]
    %v466 = vsel %vm316, %v464, 0
    %468 = vmatprep.subr.mxu0 0.0
    %469 = vmatpush1.msra.mxu0 %v312
    %470 = vmatprep.subr.mxu0 0.0
    %471 = vmatpush1.msra.mxu0 0.0
    %472 = vmatprep.subr.mxu0 0.0
    %473 = vmatpush1.msra.mxu0 0.0
    %474 = vmatprep.subr.mxu0 0.0
    %475 = vmatpush1.msra.mxu0 0.0
    %476 = vmatprep.subr.mxu0 0.0
    %477 = vmatpush1.msra.mxu0 0.0
    %478 = vmatprep.subr.mxu0 0.0
    %479 = vmatpush1.msra.mxu0 0.0
    %480 = vmatprep.subr.mxu0 0.0
    %481 = vmatpush1.msra.mxu0 0.0
    %482 = vmatprep.subr.mxu0 0.0
    %483 = vmatpush1.msra.mxu0 0.0
    %484 = vmatprep.subr.mxu0 0.0
    %485 = vmatpush1.msra.mxu0 0.0
    %486 = vmatprep.subr.mxu0 0.0
    %487 = vmatpush1.msra.mxu0 0.0
    %488 = vmatprep.subr.mxu0 0.0
    %489 = vmatpush1.msra.mxu0 0.0
    %490 = vmatprep.subr.mxu0 0.0
    %491 = vmatpush1.msra.mxu0 0.0
    %492 = vmatprep.subr.mxu0 0.0
    %493 = vmatpush1.msra.mxu0 0.0
    %494 = vmatprep.subr.mxu0 0.0
    %495 = vmatpush1.msra.mxu0 0.0
    %496 = vmatprep.subr.mxu0 0.0
    %497 = vmatpush1.msra.mxu0 0.0
    %498 = vmatprep.subr.mxu0 0.0
    %499 = vmatpush1.msra.mxu0 0.0
    %500 = vmatprep.subr.mxu0 0.0
    %501 = vmatpush1.msra.mxu0 0.0
    %502 = vmatprep.subr.mxu0 0.0
    %503 = vmatpush1.msra.mxu0 0.0
    %504 = vmatprep.subr.mxu0 0.0
    %505 = vmatpush1.msra.mxu0 0.0
    %506 = vmatprep.subr.mxu0 0.0
    %507 = vmatpush1.msra.mxu0 0.0
    %508 = vmatprep.subr.mxu0 0.0
    %509 = vmatpush1.msra.mxu0 0.0
    %510 = vmatprep.subr.mxu0 0.0
    %511 = vmatpush1.msra.mxu0 0.0
    %512 = vmatprep.subr.mxu0 0.0
    %513 = vmatpush1.msra.mxu0 0.0
    %514 = vmatprep.subr.mxu0 0.0
    %515 = vmatpush1.msra.mxu0 0.0
    %516 = vmatprep.subr.mxu0 0.0
    %517 = vmatpush1.msra.mxu0 0.0
    %518 = vmatprep.subr.mxu0 0.0
    %519 = vmatpush1.msra.mxu0 0.0
    %520 = vmatprep.subr.mxu0 0.0
    %521 = vmatpush1.msra.mxu0 0.0
    %522 = vmatprep.subr.mxu0 0.0
    %523 = vmatpush1.msra.mxu0 0.0
    %524 = vmatprep.subr.mxu0 0.0
    %525 = vmatpush1.msra.mxu0 0.0
    %526 = vmatprep.subr.mxu0 0.0
    %527 = vmatpush1.msra.mxu0 0.0
    %528 = vmatprep.subr.mxu0 0.0
    %529 = vmatpush1.msra.mxu0 0.0
    %530 = vmatprep.subr.mxu0 0.0
    %531 = vmatpush1.msra.mxu0 0.0
    %532 = vmatprep.mubr.f32.mxu0 0.0
    %533 = vmatmul.mubr.f32.gmra.mrb[0].mxu0 %v466
    %v534 = vpop.f32.mrb[0].mxu0
    %v535 = vadd.f32 0.0, %v534
    %v536 = vpop.f32.mrb[0].mxu0
    %537 = vdwg.mxu0
    %v538 = vadd.f32 %v460, %v535
    %v539 = vld [vmem:[%s5] sm:$0xff]
    %541 = vset.pattern.permute.xlu0 0
    %542 = vperm.xlu0 %541, %v539
    %v543 = vpop.permute.xlu0 %542
    %v545 = vadd.f32 %v538, %v543
    %v546 = vld [vmem:[%s6] sm:$0xff]
    %v547 = vld [vmem:[%s7] sm:$0xff]
    %549 = vset.pattern.permute.xlu0 0
    %550 = vperm.xlu0 %549, %v547
    %v551 = vpop.permute.xlu0 %550
    %v554 = vsel %vm62, %v546, 0
    %556 = vmatprep.subr.mxu0 0.0
    %557 = vmatpush1.msra.mxu0 %v143
    %558 = vmatprep.subr.mxu0 0.0
    %559 = vmatpush1.msra.mxu0 0.0
    %560 = vmatprep.subr.mxu0 0.0
    %561 = vmatpush1.msra.mxu0 0.0
    %562 = vmatprep.subr.mxu0 0.0
    %563 = vmatpush1.msra.mxu0 0.0
    %564 = vmatprep.subr.mxu0 0.0
    %565 = vmatpush1.msra.mxu0 0.0
    %566 = vmatprep.subr.mxu0 0.0
    %567 = vmatpush1.msra.mxu0 0.0
    %568 = vmatprep.subr.mxu0 0.0
    %569 = vmatpush1.msra.mxu0 0.0
    %570 = vmatprep.subr.mxu0 0.0
    %571 = vmatpush1.msra.mxu0 0.0
    %572 = vmatprep.subr.mxu0 0.0
    %573 = vmatpush1.msra.mxu0 0.0
    %574 = vmatprep.subr.mxu0 0.0
    %575 = vmatpush1.msra.mxu0 0.0
    %576 = vmatprep.subr.mxu0 0.0
    %577 = vmatpush1.msra.mxu0 0.0
    %578 = vmatprep.subr.mxu0 0.0
    %579 = vmatpush1.msra.mxu0 0.0
    %580 = vmatprep.subr.mxu0 0.0
    %581 = vmatpush1.msra.mxu0 0.0
    %582 = vmatprep.subr.mxu0 0.0
    %583 = vmatpush1.msra.mxu0 0.0
    %584 = vmatprep.subr.mxu0 0.0
    %585 = vmatpush1.msra.mxu0 0.0
    %586 = vmatprep.subr.mxu0 0.0
    %587 = vmatpush1.msra.mxu0 0.0
    %588 = vmatprep.subr.mxu0 0.0
    %589 = vmatpush1.msra.mxu0 0.0
    %590 = vmatprep.subr.mxu0 0.0
    %591 = vmatpush1.msra.mxu0 0.0
    %592 = vmatprep.subr.mxu0 0.0
    %593 = vmatpush1.msra.mxu0 0.0
    %594 = vmatprep.subr.mxu0 0.0
    %595 = vmatpush1.msra.mxu0 0.0
    %596 = vmatprep.subr.mxu0 0.0
    %597 = vmatpush1.msra.mxu0 0.0
    %598 = vmatprep.subr.mxu0 0.0
    %599 = vmatpush1.msra.mxu0 0.0
    %600 = vmatprep.subr.mxu0 0.0
    %601 = vmatpush1.msra.mxu0 0.0
    %602 = vmatprep.subr.mxu0 0.0
    %603 = vmatpush1.msra.mxu0 0.0
    %604 = vmatprep.subr.mxu0 0.0
    %605 = vmatpush1.msra.mxu0 0.0
    %606 = vmatprep.subr.mxu0 0.0
    %607 = vmatpush1.msra.mxu0 0.0
    %608 = vmatprep.subr.mxu0 0.0
    %609 = vmatpush1.msra.mxu0 0.0
    %610 = vmatprep.subr.mxu0 0.0
    %611 = vmatpush1.msra.mxu0 0.0
    %612 = vmatprep.subr.mxu0 0.0
    %613 = vmatpush1.msra.mxu0 0.0
    %614 = vmatprep.subr.mxu0 0.0
    %615 = vmatpush1.msra.mxu0 0.0
    %616 = vmatprep.subr.mxu0 0.0
    %617 = vmatpush1.msra.mxu0 0.0
    %618 = vmatprep.subr.mxu0 0.0
    %619 = vmatpush1.msra.mxu0 0.0
    %620 = vmatprep.mubr.f32.mxu0 0.0
    %621 = vmatmul.mubr.f32.gmra.mrb[0].mxu0 %v554
    %v622 = vpop.f32.mrb[0].mxu0
    %v623 = vadd.f32 %v551, %v622
    %v624 = vpop.f32.mrb[0].mxu0
    %625 = vdwg.mxu0
    %v626 = vadd.f32 %v545, %v623
    %v627 = vmax.f32 %v626, 0.0
    %vm628 = vcmask 261120
    %629 = vst.msk [vmem:[#allocation2] sm:$0xff] %vm628, %v627
    // Predicated region
    $region34: #{tpu_custom_call.1} parent=1 // pred_check
      _
    $region35: #{tpu_custom_call.1} parent=1 // pred_check_branch
      %631 = sbr.rel (0) target = $region37
    $region36: #{tpu_custom_call.1} parent=1 // pred_region
      %s633 = ssub.s32 128, 128
      %634 = vsyncadd [#allocation3], %s633
      %s636 = sshll.u32 [#allocation2], 4
      %s637 = int_to_ptr.vmem [resolvable:$true] %s636
      %639 = dma.vmem_to_hbm [thread:$0]  %s637, 128, %s8, [#allocation3]
    $region37: #{tpu_custom_call.1} parent=1 // pred_fallthru
      _
    // Predicated region
    $region38: #{tpu_custom_call.1} parent=1 // pred_check
      _
    $region39: #{tpu_custom_call.1} parent=1 // pred_check_branch
      %641 = sbr.rel (0) target = $region41
    $region40: #{tpu_custom_call.1} parent=1 // pred_region
      %642 = dma.done [#allocation3], 128
    $region41: #{tpu_custom_call.1} parent=1 // pred_fallthru
      _
    %643 = vsyncpa [#allocation3], 1

</llo_original>
